<compile_context>
chip_gen: v7x
topology: tpu7x:2x2x1
jax: 0.10.0
libtpu: 0.0.40
codegen_flags: <defaults>
</compile_context>

<pallas_src>
import jax
import jax.numpy as jnp
import numpy as np
from jax.experimental import pallas as pl
from jax.experimental.pallas import tpu as pltpu

NEG_INF = -10000000000.0          # matches masked_fill(-1e10)


# ---------------------------------------------------------------------------
# Generation-aware VMEM / block-size policy
# ---------------------------------------------------------------------------
def _tpu_vmem_capacity_bytes():
    try:
        return int(pltpu.get_tpu_info().vmem_capacity_bytes)
    except Exception:
        return 64 << 20           # conservative fallback (v7x per-TC VMEM)


_VMEM_CAP = _tpu_vmem_capacity_bytes()
# 128 MiB chips (v5e/v6e): 8 MiB streaming blocks; 64 MiB chips (v7x): 4 MiB.
_TARGET_BLOCK_BYTES = (8 << 20) if _VMEM_CAP >= (96 << 20) else (4 << 20)
_VMEM_LIMIT_CAP = min((_VMEM_CAP * 3) // 4, 96 << 20)


def _round_up(x, m):
    return ((x + m - 1) // m) * m


def _vmem_limit(est_block_bytes):
    """Explicit scoped-VMEM request.

    Always at least the v6e/v7x default (32 MiB) -- which also lifts v5e's
    16 MiB default -- 1.5x the estimated double-buffered working set, and
    always below 3/4 of physical per-core VMEM (headroom for pipeline bufs).
    """
    want = max(int(est_block_bytes * 3 // 2), 32 << 20)
    return min(want, _VMEM_LIMIT_CAP)


def _pick_rows(total, row_bytes, target=None):
    """Rows-per-block for streaming a (total, row_bytes) array.

    Returns (rows, padded_total):
      1. the largest 128-multiple divisor of `total` whose block fits the
         byte target (no padding needed), else
      2. the whole array as one block if it fits the target, else
      3. a ~target-sized 128-aligned chunk, with `total` padded up to a
         multiple of it (pad rows are masked/sliced off by the caller).
    """
    if target is None:
        target = _TARGET_BLOCK_BYTES
    max_rows = max(int(target // max(row_bytes, 1)), 1)
    best = 0
    k = 128
    limit = min(total, max_rows)
    while k <= limit:
        if total % k == 0:
            best = k
        k += 128
    if best:
        return best, total
    if total * row_bytes <= target:
        return total, total
    rows = max((max_rows // 128) * 128, 128)
    return rows, _round_up(total, rows)


# ---------------------------------------------------------------------------
# Kernel 1: QA head -- one MXU contraction + lane-dense full-tile stores
#   start/end logits over a flat token stream of B*S tokens.
# ---------------------------------------------------------------------------
def _qa_head_kernel(seq_ref, mask_ref, w_ref, b_ref, start_ref, end_ref):
    # seq_ref: (Tm, H)  mask_ref: (1, Tm)  w_ref: (2, H)  b_ref: (2, 1)
    x = seq_ref[...]
    w = w_ref[...]
    if w.dtype != x.dtype:
        w = w.astype(x.dtype)
    # (2, H) . (Tm, H)^T -> (2, Tm): whole block in one contraction; the token
    # axis Tm stays on the 128-lane axis (lane-dense logits and stores).
    logits = jax.lax.dot_general(
        w, x, dimension_numbers=(((1,), (1,)), ((), ())),
        preferred_element_type=jnp.float32) + b_ref[...]          # (2, Tm)
    bad = mask_ref[...] != 1.0                                    # (1, Tm)
    start_ref[...] = jnp.where(bad, NEG_INF, logits[0:1, :]).astype(start_ref.dtype)
    end_ref[...] = jnp.where(bad, NEG_INF, logits[1:2, :]).astype(end_ref.dtype)


def qa_head(sequence_output, paragraph_mask, qa_w, qa_b):
    B, S, H = sequence_output.shape
    M = B * S
    it = sequence_output.dtype.itemsize
    mit = paragraph_mask.dtype.itemsize

    # Free (metadata-only) reshapes: merge batch & sequence into one token axis.
    seq2d = sequence_output.reshape(M, H)
    mask2d = paragraph_mask.reshape(1, M)

    tm, m_pad = _pick_rows(M, H * it)
    if m_pad != M:
        seq2d = jnp.pad(seq2d, ((0, m_pad - M), (0, 0)))
        mask2d = jnp.pad(mask2d, ((0, 0), (0, m_pad - M)))   # pad -> mask!=1 -> sliced off
    grid = (m_pad // tm,)
    b2 = qa_b.reshape(2, 1).astype(jnp.float32)

    flops = 2 * 2 * M * H
    bytes_accessed = (m_pad * H * it + m_pad * mit
                      + 2 * H * qa_w.dtype.itemsize + 2 * 4
                      + 2 * m_pad * 4)
    cost = pl.CostEstimate(flops=flops, transcendentals=0,
                           bytes_accessed=bytes_accessed)

    # double-buffered seq block + mask block + both double-buffered outputs
    block_bytes = 2 * tm * H * it + 2 * tm * mit + 2 * 2 * tm * 4 + 2 * H * 4

    start2d, end2d = pl.pallas_call(
        _qa_head_kernel,
        out_shape=(jax.ShapeDtypeStruct((1, m_pad), jnp.float32),
                   jax.ShapeDtypeStruct((1, m_pad), jnp.float32)),
        grid=grid,
        in_specs=[
            pl.BlockSpec((tm, H), lambda i: (i, 0)),
            pl.BlockSpec((1, tm), lambda i: (0, i)),
            pl.BlockSpec((2, H), lambda i: (0, 0)),
            pl.BlockSpec((2, 1), lambda i: (0, 0)),
        ],
        out_specs=(
            pl.BlockSpec((1, tm), lambda i: (0, i)),
            pl.BlockSpec((1, tm), lambda i: (0, i)),
        ),
        compiler_params=pltpu.CompilerParams(
            dimension_semantics=("parallel",),   # independent token blocks
            vmem_limit_bytes=_vmem_limit(block_bytes)),
        cost_estimate=cost,
    )(seq2d, mask2d, qa_w, b2)

    start = start2d[:, :M].reshape(B, S)
    end = end2d[:, :M].reshape(B, S)
    return start, end


# ---------------------------------------------------------------------------
# Kernel 2: tiny single-step kernel -- q-projection + select head
#   q0  = proj_q(q_cls)[0]                       -> (1, Dp)  (reused by rank)
#   sel = select_outputs(pooled).view(1, -1)     -> (1, B)
# ---------------------------------------------------------------------------
def _proj_select_kernel(qcls_ref, wq_ref, bq_ref, pooled_ref, ws_ref, bs_ref,
                        q0_ref, sel_ref):
    q0 = jax.lax.dot_general(
        qcls_ref[0:1, :].astype(jnp.float32), wq_ref[...].astype(jnp.float32),
        dimension_numbers=(((1,), (1,)), ((), ())),
        preferred_element_type=jnp.float32) + bq_ref[...]          # (1, Dp)
    q0_ref[...] = q0.astype(q0_ref.dtype)
    sel = jax.lax.dot_general(
        ws_ref[...].astype(jnp.float32), pooled_ref[...].astype(jnp.float32),
        dimension_numbers=(((1,), (1,)), ((), ())),
        preferred_element_type=jnp.float32) + bs_ref[...]          # (1, B)
    sel_ref[...] = sel.astype(sel_ref.dtype)


def proj_select_heads(q_cls, pooled_output, proj_q_w, proj_q_b,
                      select_w, select_b):
    Bq, H = q_cls.shape
    Dp = proj_q_w.shape[0]
    B = pooled_output.shape[0]
    bq2 = proj_q_b.reshape(1, Dp).astype(jnp.float32)
    bs2 = select_b.reshape(1, 1).astype(jnp.float32)

    flops = 2 * Dp * H + 2 * B * H
    bytes_accessed = (Bq * H * q_cls.dtype.itemsize
                      + Dp * H * proj_q_w.dtype.itemsize + Dp * 4
                      + B * H * pooled_output.dtype.itemsize
                      + H * select_w.dtype.itemsize + 4
                      + Dp * 4 + B * 4)
    cost = pl.CostEstimate(flops=flops, transcendentals=0,
                           bytes_accessed=bytes_accessed)

    q0, sel = pl.pallas_call(
        _proj_select_kernel,
        out_shape=(jax.ShapeDtypeStruct((1, Dp), jnp.float32),
                   jax.ShapeDtypeStruct((1, B), jnp.float32)),
        grid=(1,),
        in_specs=[
            pl.BlockSpec((Bq, H), lambda i: (0, 0)),
            pl.BlockSpec((Dp, H), lambda i: (0, 0)),
            pl.BlockSpec((1, Dp), lambda i: (0, 0)),
            pl.BlockSpec((B, H), lambda i: (0, 0)),
            pl.BlockSpec((1, H), lambda i: (0, 0)),
            pl.BlockSpec((1, 1), lambda i: (0, 0)),
        ],
        out_specs=(
            pl.BlockSpec((1, Dp), lambda i: (0, 0)),
            pl.BlockSpec((1, B), lambda i: (0, 0)),
        ),
        compiler_params=pltpu.CompilerParams(dimension_semantics=("arbitrary",)),
        cost_estimate=cost,
    )(q_cls, proj_q_w, bq2, pooled_output, select_w, bs2)
    return q0, sel


# ---------------------------------------------------------------------------
# Kernel 3: retriever rank head -- pure paragraph-table stream
#   rank = q0 @ para_embed^T  -> (1, N); N chunked, "parallel" grid axis.
# ---------------------------------------------------------------------------
def _rank_kernel(q0_ref, para_ref, rank_ref):
    p = para_ref[...]
    if p.dtype != jnp.float32:
        p = p.astype(jnp.float32)      # matches reference f32 GEMV numerics
    rank_ref[...] = jax.lax.dot_general(
        q0_ref[...], p, dimension_numbers=(((1,), (1,)), ((), ())),
        preferred_element_type=jnp.float32).astype(rank_ref.dtype)   # (1, tn)


def rank_head(q0, para_embed):
    N, Dp = para_embed.shape
    it = para_embed.dtype.itemsize
    tn, n_pad = _pick_rows(N, Dp * it)
    if n_pad != N:
        para_embed = jnp.pad(para_embed, ((0, n_pad - N), (0, 0)))
    grid = (n_pad // tn,)

    flops = 2 * n_pad * Dp
    bytes_accessed = n_pad * Dp * it + Dp * 4 + n_pad * 4
    cost = pl.CostEstimate(flops=flops, transcendentals=0,
                           bytes_accessed=bytes_accessed)
    block_bytes = 2 * tn * Dp * it + Dp * 4 + 2 * tn * 4

    rank = pl.pallas_call(
        _rank_kernel,
        out_shape=jax.ShapeDtypeStruct((1, n_pad), jnp.float32),
        grid=grid,
        in_specs=[
            pl.BlockSpec((1, Dp), lambda n: (0, 0)),
            pl.BlockSpec((tn, Dp), lambda n: (n, 0)),
        ],
        out_specs=pl.BlockSpec((1, tn), lambda n: (0, n)),
        compiler_params=pltpu.CompilerParams(
            dimension_semantics=("parallel",),   # each chunk writes its own block
            vmem_limit_bytes=_vmem_limit(block_bytes)),
        cost_estimate=cost,
    )(q0, para_embed)
    return rank[:, :N]


# ---------------------------------------------------------------------------
# Full (inference) forward
# ---------------------------------------------------------------------------
def bert_retrieve_qa_forward(batch, params, add_select=True):
    start_logits, end_logits = qa_head(
        batch['sequence_output'], batch['paragraph_mask'],
        params['qa_w'], params['qa_b'])
    q0, select_logits = proj_select_heads(
        batch['q_cls'], batch['pooled_output'],
        params['proj_q_w'], params['proj_q_b'],
        params['select_w'], params['select_b'])
    rank_logits = rank_head(q0, batch['para_embed'])
    out = {'start_logits': start_logits,
           'end_logits': end_logits,
           'rank_logits': rank_logits}
    if add_select:
        out['select_logits'] = select_logits
    return out


def ref_forward(batch, params, add_select=True):
    seq = batch['sequence_output'].astype(jnp.float32)
    logits = seq @ params['qa_w'].astype(jnp.float32).T + params['qa_b']   # (B,S,2)
    bad = batch['paragraph_mask'] != 1.0
    start = jnp.where(bad, NEG_INF, logits[..., 0])
    end = jnp.where(bad, NEG_INF, logits[..., 1])
    q = batch['q_cls'] @ params['proj_q_w'].T + params['proj_q_b']
    rank = q[0:1] @ batch['para_embed'].astype(jnp.float32).T
    out = {'start_logits': start, 'end_logits': end, 'rank_logits': rank}
    if add_select:
        sel = batch['pooled_output'] @ params['select_w'].T + params['select_b']
        out['select_logits'] = sel.reshape(1, -1)
    return out


def init_params(key, hidden, proj_dim):
    ks = jax.random.split(key, 6)
    s = 0.02
    return {
        # nn.Linear(hidden, 2)
        'qa_w': s * jax.random.normal(ks[0], (2, hidden), jnp.float32),
        'qa_b': s * jax.random.normal(ks[1], (2,), jnp.float32),
        # retriever.proj_q = nn.Linear(hidden, proj_dim)
        'proj_q_w': s * jax.random.normal(ks[2], (proj_dim, hidden), jnp.float32),
        'proj_q_b': s * jax.random.normal(ks[3], (proj_dim,), jnp.float32),
        # select_outputs = nn.Linear(hidden, 1)
        'select_w': s * jax.random.normal(ks[4], (1, hidden), jnp.float32),
        'select_b': s * jax.random.normal(ks[5], (1,), jnp.float32),
    }


if __name__ == "__main__":
    key = jax.random.PRNGKey(0)
    B, S, H, Dp, N_para, Bq = 2, 128, 128, 128, 256, 1
    ks = jax.random.split(key, 6)
    batch = {
        'sequence_output': jax.random.normal(ks[0], (B, S, H), jnp.float32),
        'pooled_output':   jax.random.normal(ks[1], (B, H), jnp.float32),
        'q_cls':           jax.random.normal(ks[2], (Bq, H), jnp.float32),
        'paragraph_mask':  (jax.random.uniform(ks[3], (B, S)) > 0.3).astype(jnp.float32),
        'para_embed':      jax.random.normal(ks[4], (N_para, Dp), jnp.float32),
    }
    params = init_params(ks[5], H, Dp)

    # --- float32 path: tight check against the pure-JAX reference ----------
    out = bert_retrieve_qa_forward(batch, params, add_select=True)
    out = jax.tree_util.tree_map(jax.block_until_ready, out)
    ref = ref_forward(batch, params, add_select=True)
    for k in ref:
        np.testing.assert_allclose(np.asarray(out[k]), np.asarray(ref[k]),
                                   rtol=1e-5, atol=1e-5)

    # --- bf16 path: halve HBM traffic on the big activations ----------------
    seq_bf = batch['sequence_output'].astype(jnp.bfloat16)
    para_bf = batch['para_embed'].astype(jnp.bfloat16)
    qa_w_bf = params['qa_w'].astype(jnp.bfloat16)
    batch_bf = dict(batch, sequence_output=seq_bf, para_embed=para_bf)
    params_bf = dict(params, qa_w=qa_w_bf)
    out_bf = bert_retrieve_qa_forward(batch_bf, params_bf, add_select=True)
    out_bf = jax.tree_util.tree_map(jax.block_until_ready, out_bf)
    ref_bf = ref_forward(batch_bf, params_bf, add_select=True)  # ref upcasts bf16 exactly
    for k in ref_bf:
        np.testing.assert_allclose(np.asarray(out_bf[k]), np.asarray(ref_bf[k]),
                                   rtol=2e-2, atol=2e-2)

    print("KERNEL_OK")
</pallas_src>

<mosaic_0001>
module attributes {stable_mosaic.version = 11 : i64} {
  func.func @_qa_head_kernel(%arg0: i32, %arg1: memref<256x128xf32, #tpu.memory_space<vmem>>, %arg2: memref<1x256xf32, #tpu.memory_space<vmem>>, %arg3: memref<2x128xf32, #tpu.memory_space<vmem>>, %arg4: memref<2x1xf32, #tpu.memory_space<vmem>>, %arg5: memref<1x256xf32, #tpu.memory_space<vmem>>, %arg6: memref<1x256xf32, #tpu.memory_space<vmem>>) attributes {dimension_semantics = [#tpu.dimension_semantics<parallel>], iteration_bounds = array<i64: 1>, scalar_prefetch = 0 : i64, scratch_operands = 0 : i64, tpu.core_type = #tpu.core_type<tc>, window_params = [{transform_indices = @transform_0, window_bounds = array<i64: 256, 128>}, {transform_indices = @transform_1, window_bounds = array<i64: 1, 256>}, {pipeline_mode = #tpu.pipeline_mode<synchronous>, transform_indices = @transform_2, window_bounds = array<i64: 2, 128>}, {pipeline_mode = #tpu.pipeline_mode<synchronous>, transform_indices = @transform_3, window_bounds = array<i64: 2, 1>}, {transform_indices = @transform_4, window_bounds = array<i64: 1, 256>}, {transform_indices = @transform_5, window_bounds = array<i64: 1, 256>}]} {
    %c0 = arith.constant 0 : index
    %c0_0 = arith.constant 0 : index
    %0 = vector.load %arg1[%c0, %c0_0] : memref<256x128xf32, #tpu.memory_space<vmem>>, vector<256x128xf32>
    %c0_1 = arith.constant 0 : index
    %c0_2 = arith.constant 0 : index
    %1 = vector.load %arg3[%c0_1, %c0_2] : memref<2x128xf32, #tpu.memory_space<vmem>>, vector<2x128xf32>
    %cst = arith.constant dense<0.000000e+00> : vector<2x256xf32>
    %2 = tpu.matmul %1, %0, %cst {dimension_numbers = #tpu.dot_dimension_numbers<[1], [1], [0], [0], [0, 0, 1, 0], [], []>} : vector<2x128xf32>, vector<256x128xf32>, vector<2x256xf32> -> vector<2x256xf32>
    %c0_3 = arith.constant 0 : index
    %c0_4 = arith.constant 0 : index
    %3 = vector.load %arg4[%c0_3, %c0_4] : memref<2x1xf32, #tpu.memory_space<vmem>>, vector<2x1xf32>
    %4 = vector.broadcast %3 : vector<2x1xf32> to vector<2x256xf32>
    %5 = arith.addf %2, %4 : vector<2x256xf32>
    %c0_5 = arith.constant 0 : index
    %c0_6 = arith.constant 0 : index
    %6 = vector.load %arg2[%c0_5, %c0_6] : memref<1x256xf32, #tpu.memory_space<vmem>>, vector<1x256xf32>
    %cst_7 = arith.constant 1.000000e+00 : f32
    %7 = vector.broadcast %cst_7 : f32 to vector<1x256xf32>
    %8 = arith.cmpf one, %6, %7 : vector<1x256xf32>
    %9 = vector.extract_strided_slice %5 {offsets = [0, 0], sizes = [1, 256], strides = [1, 1]} : vector<2x256xf32> to vector<1x256xf32>
    %cst_8 = arith.constant -1.000000e+10 : f32
    %10 = vector.broadcast %cst_8 : f32 to vector<1x256xf32>
    %11 = arith.select %8, %10, %9 : vector<1x256xi1>, vector<1x256xf32>
    %c0_9 = arith.constant 0 : index
    %c0_10 = arith.constant 0 : index
    %12 = vector.load %arg5[%c0_9, %c0_10] : memref<1x256xf32, #tpu.memory_space<vmem>>, vector<1x256xf32>
    tpu.vector_store %arg5[%c0_9, %c0_10], %11 {strides = array<i32>} : memref<1x256xf32, #tpu.memory_space<vmem>>, vector<1x256xf32>,
    %13 = vector.extract_strided_slice %5 {offsets = [1, 0], sizes = [1, 256], strides = [1, 1]} : vector<2x256xf32> to vector<1x256xf32>
    %cst_11 = arith.constant -1.000000e+10 : f32
    %14 = vector.broadcast %cst_11 : f32 to vector<1x256xf32>
    %15 = arith.select %8, %14, %13 : vector<1x256xi1>, vector<1x256xf32>
    %c0_12 = arith.constant 0 : index
    %c0_13 = arith.constant 0 : index
    %16 = vector.load %arg6[%c0_12, %c0_13] : memref<1x256xf32, #tpu.memory_space<vmem>>, vector<1x256xf32>
    tpu.vector_store %arg6[%c0_12, %c0_13], %15 {strides = array<i32>} : memref<1x256xf32, #tpu.memory_space<vmem>>, vector<1x256xf32>,
    return
  }
  func.func @transform_0(%arg0: i32) -> (i32, i32) {
    %c0_i32 = arith.constant 0 : i32
    %c0_i32_0 = arith.constant 0 : i32
    return %arg0, %c0_i32 : i32, i32
  }
  func.func @transform_1(%arg0: i32) -> (i32, i32) {
    %c0_i32 = arith.constant 0 : i32
    %c0_i32_0 = arith.constant 0 : i32
    return %c0_i32, %arg0 : i32, i32
  }
  func.func @transform_2(%arg0: i32) -> (i32, i32) {
    %c0_i32 = arith.constant 0 : i32
    %c0_i32_0 = arith.constant 0 : i32
    %c0_i32_1 = arith.constant 0 : i32
    return %c0_i32, %c0_i32_0 : i32, i32
  }
  func.func @transform_3(%arg0: i32) -> (i32, i32) {
    %c0_i32 = arith.constant 0 : i32
    %c0_i32_0 = arith.constant 0 : i32
    %c0_i32_1 = arith.constant 0 : i32
    return %c0_i32, %c0_i32_0 : i32, i32
  }
  func.func @transform_4(%arg0: i32) -> (i32, i32) {
    %c0_i32 = arith.constant 0 : i32
    %c0_i32_0 = arith.constant 0 : i32
    return %c0_i32, %arg0 : i32, i32
  }
  func.func @transform_5(%arg0: i32) -> (i32, i32) {
    %c0_i32 = arith.constant 0 : i32
    %c0_i32_0 = arith.constant 0 : i32
    return %c0_i32, %arg0 : i32, i32
  }
}

</mosaic_0001>

<llo_original>
// kernel: tpu_custom_call.1
$region0: #{tpu_custom_call.1}
  #allocation0 [shape = 'u32[]', space=smem, size = 0x4, offset = 0x4, fixed_abs, tag = 'smem constant byte address 0x4 - core index']
  #allocation1 [shape = 'u32[144,128]{1,0:T(1,128)}', space=vmem, size = 0x12000, scoped, tag = 'internal scratch']
  %s0 = inlined_call_operand.hbm [shape: f32[256,128], index: 0, kind: input, shape index: {}]
  %s1 = inlined_call_operand.vmem [shape: f32[1,256], index: 1, kind: input, shape index: {}]
  %s2 = inlined_call_operand.vmem [shape: f32[2,128], index: 2, kind: input, shape index: {}]
  %s3 = inlined_call_operand.vmem [shape: f32[2,1], index: 3, kind: input, shape index: {}]
  %s4 = inlined_call_operand.hbm [shape: f32[1,256], index: 4, kind: output, shape index: {0}]
  %s5 = inlined_call_operand.hbm [shape: f32[1,256], index: 5, kind: output, shape index: {1}]
  %6 = xla_tuple %s4, %s5
  %s7 = sld [smem:[#allocation0]]
  $region38: #{tpu_custom_call.1} parent=0
    _
  %s9 = ssub.s32 1, %s7
  %s10 = scalar_select 0, %s9, %s7
  $region1: #{tpu_custom_call.1} parent=0
    #allocation2 [shape = 'u8[131072]{0}', space=vmem, size = 0x20000, scoped, tag = 'input window, operand 0, single buffered']
    #allocation3 [shape = 's32[1]{0}', space=sflag, size = 0x4, scoped, tag = 'scoped memory for tpu_custom_call.1']
    #allocation4 [shape = 's32[1]{0}', space=sflag, size = 0x4, scoped, tag = 'scoped memory for tpu_custom_call.1']
    #allocation5 [shape = 'u8[1024]{0}', space=vmem, size = 0x400, scoped, tag = 'output window, operand 0, single buffered']
    #allocation6 [shape = 'u8[1024]{0}', space=vmem, size = 0x400, scoped, tag = 'output window, operand 1, single buffered']
    #allocation7 [shape = 's32[1]{0}', space=sflag, size = 0x4, scoped, tag = 'scoped memory for tpu_custom_call.1']
    %11 = vsyncpa [#allocation3], 0
    %12 = vsyncpa [#allocation4], 0
    %13 = vsyncpa [#allocation7], 0
    // Predicated region
    $region2: #{tpu_custom_call.1} parent=1 // pred_check
      _
    $region3: #{tpu_custom_call.1} parent=1 // pred_check_branch
      %15 = sbr.rel (0) target = $region5
    $region4: #{tpu_custom_call.1} parent=1 // pred_region
      %s17 = ssub.s32 4096, 4096
      %18 = vsyncadd [#allocation3], %s17
      %s19 = sshll.u32 [#allocation2], 4
      %s20 = int_to_ptr.vmem [resolvable:$true] %s19
      %25 = dma.hbm_to_vmem [thread:$0]  %s0, 4096, %s20, [#allocation3], 128, 128, 8
    $region5: #{tpu_custom_call.1} parent=1 // pred_fallthru
      _
    // Predicated region
    $region6: #{tpu_custom_call.1} parent=1 // pred_check
      _
    $region7: #{tpu_custom_call.1} parent=1 // pred_check_branch
      %27 = sbr.rel (0) target = $region9
    $region8: #{tpu_custom_call.1} parent=1 // pred_region
      _
    $region9: #{tpu_custom_call.1} parent=1 // pred_fallthru
      _
    // Predicated region
    $region10: #{tpu_custom_call.1} parent=1 // pred_check
      _
    $region11: #{tpu_custom_call.1} parent=1 // pred_check_branch
      %29 = sbr.rel (0) target = $region13
    $region12: #{tpu_custom_call.1} parent=1 // pred_region
      _
    $region13: #{tpu_custom_call.1} parent=1 // pred_fallthru
      _
    // Predicated region
    $region14: #{tpu_custom_call.1} parent=1 // pred_check
      _
    $region15: #{tpu_custom_call.1} parent=1 // pred_check_branch
      %31 = sbr.rel (0) target = $region17
    $region16: #{tpu_custom_call.1} parent=1 // pred_region
      _
    $region17: #{tpu_custom_call.1} parent=1 // pred_fallthru
      _
    // Predicated region
    $region18: #{tpu_custom_call.1} parent=1 // pred_check
      _
    $region19: #{tpu_custom_call.1} parent=1 // pred_check_branch
      %33 = sbr.rel (0) target = $region21
    $region20: #{tpu_custom_call.1} parent=1 // pred_region
      %34 = dma.done [#allocation3], 4096
    $region21: #{tpu_custom_call.1} parent=1 // pred_fallthru
      _
    %v35 = vld [vmem:[#allocation2] sm:$0xff]
    %v36 = vld [vmem:[#allocation2 + $0x8] sm:$0xff]
    %v37 = vld [vmem:[#allocation2 + $0x10] sm:$0xff]
    %v38 = vld [vmem:[#allocation2 + $0x18] sm:$0xff]
    %v39 = vld [vmem:[#allocation2 + $0x20] sm:$0xff]
    %v40 = vld [vmem:[#allocation2 + $0x28] sm:$0xff]
    %v41 = vld [vmem:[#allocation2 + $0x30] sm:$0xff]
    %v42 = vld [vmem:[#allocation2 + $0x38] sm:$0xff]
    %v43 = vld [vmem:[#allocation2 + $0x40] sm:$0xff]
    %v44 = vld [vmem:[#allocation2 + $0x48] sm:$0xff]
    %v45 = vld [vmem:[#allocation2 + $0x50] sm:$0xff]
    %v46 = vld [vmem:[#allocation2 + $0x58] sm:$0xff]
    %v47 = vld [vmem:[#allocation2 + $0x60] sm:$0xff]
    %v48 = vld [vmem:[#allocation2 + $0x68] sm:$0xff]
    %v49 = vld [vmem:[#allocation2 + $0x70] sm:$0xff]
    %v50 = vld [vmem:[#allocation2 + $0x78] sm:$0xff]
    %v51 = vld [vmem:[#allocation2 + $0x80] sm:$0xff]
    %v52 = vld [vmem:[#allocation2 + $0x88] sm:$0xff]
    %v53 = vld [vmem:[#allocation2 + $0x90] sm:$0xff]
    %v54 = vld [vmem:[#allocation2 + $0x98] sm:$0xff]
    %v55 = vld [vmem:[#allocation2 + $0xa0] sm:$0xff]
    %v56 = vld [vmem:[#allocation2 + $0xa8] sm:$0xff]
    %v57 = vld [vmem:[#allocation2 + $0xb0] sm:$0xff]
    %v58 = vld [vmem:[#allocation2 + $0xb8] sm:$0xff]
    %v59 = vld [vmem:[#allocation2 + $0xc0] sm:$0xff]
    %v60 = vld [vmem:[#allocation2 + $0xc8] sm:$0xff]
    %v61 = vld [vmem:[#allocation2 + $0xd0] sm:$0xff]
    %v62 = vld [vmem:[#allocation2 + $0xd8] sm:$0xff]
    %v63 = vld [vmem:[#allocation2 + $0xe0] sm:$0xff]
    %v64 = vld [vmem:[#allocation2 + $0xe8] sm:$0xff]
    %v65 = vld [vmem:[#allocation2 + $0xf0] sm:$0xff]
    %v66 = vld [vmem:[#allocation2 + $0xf8] sm:$0xff]
    %v67 = vld [vmem:[%s2] sm:$0x3]
    %v68 = vld [vmem:[%s3] sm:$0x3]
    %70 = vset.pattern.permute.xlu0 0
    %71 = vperm.xlu0 %70, %v68
    %v72 = vpop.permute.xlu0 %71
    %74 = vmatprep.subr.mxu0 0.0
    %75 = vmatpush1.xpose.msra.mxu0 %v35
    %76 = vmatprep.subr.mxu0 0.0
    %77 = vmatpush1.xpose.msra.mxu0 %v36
    %78 = vmatprep.subr.mxu0 0.0
    %79 = vmatpush1.xpose.msra.mxu0 %v37
    %80 = vmatprep.subr.mxu0 0.0
    %81 = vmatpush1.xpose.msra.mxu0 %v38
    %82 = vmatprep.subr.mxu0 0.0
    %83 = vmatpush1.xpose.msra.mxu0 %v39
    %84 = vmatprep.subr.mxu0 0.0
    %85 = vmatpush1.xpose.msra.mxu0 %v40
    %86 = vmatprep.subr.mxu0 0.0
    %87 = vmatpush1.xpose.msra.mxu0 %v41
    %88 = vmatprep.subr.mxu0 0.0
    %89 = vmatpush1.xpose.msra.mxu0 %v42
    %90 = vmatprep.subr.mxu0 0.0
    %91 = vmatpush1.xpose.msra.mxu0 %v43
    %92 = vmatprep.subr.mxu0 0.0
    %93 = vmatpush1.xpose.msra.mxu0 %v44
    %94 = vmatprep.subr.mxu0 0.0
    %95 = vmatpush1.xpose.msra.mxu0 %v45
    %96 = vmatprep.subr.mxu0 0.0
    %97 = vmatpush1.xpose.msra.mxu0 %v46
    %98 = vmatprep.subr.mxu0 0.0
    %99 = vmatpush1.xpose.msra.mxu0 %v47
    %100 = vmatprep.subr.mxu0 0.0
    %101 = vmatpush1.xpose.msra.mxu0 %v48
    %102 = vmatprep.subr.mxu0 0.0
    %103 = vmatpush1.xpose.msra.mxu0 %v49
    %104 = vmatprep.subr.mxu0 0.0
    %105 = vmatpush1.xpose.msra.mxu0 %v50
    %106 = vmatprep.subr.mxu0 0.0
    %107 = vmatpush1.xpose.msra.mxu0 %v51
    %108 = vmatprep.subr.mxu0 0.0
    %109 = vmatpush1.xpose.msra.mxu0 %v52
    %110 = vmatprep.subr.mxu0 0.0
    %111 = vmatpush1.xpose.msra.mxu0 %v53
    %112 = vmatprep.subr.mxu0 0.0
    %113 = vmatpush1.xpose.msra.mxu0 %v54
    %114 = vmatprep.subr.mxu0 0.0
    %115 = vmatpush1.xpose.msra.mxu0 %v55
    %116 = vmatprep.subr.mxu0 0.0
    %117 = vmatpush1.xpose.msra.mxu0 %v56
    %118 = vmatprep.subr.mxu0 0.0
    %119 = vmatpush1.xpose.msra.mxu0 %v57
    %120 = vmatprep.subr.mxu0 0.0
    %121 = vmatpush1.xpose.msra.mxu0 %v58
    %122 = vmatprep.subr.mxu0 0.0
    %123 = vmatpush1.xpose.msra.mxu0 %v59
    %124 = vmatprep.subr.mxu0 0.0
    %125 = vmatpush1.xpose.msra.mxu0 %v60
    %126 = vmatprep.subr.mxu0 0.0
    %127 = vmatpush1.xpose.msra.mxu0 %v61
    %128 = vmatprep.subr.mxu0 0.0
    %129 = vmatpush1.xpose.msra.mxu0 %v62
    %130 = vmatprep.subr.mxu0 0.0
    %131 = vmatpush1.xpose.msra.mxu0 %v63
    %132 = vmatprep.subr.mxu0 0.0
    %133 = vmatpush1.xpose.msra.mxu0 %v64
    %134 = vmatprep.subr.mxu0 0.0
    %135 = vmatpush1.xpose.msra.mxu0 %v65
    %136 = vmatprep.subr.mxu0 0.0
    %137 = vmatpush1.xpose.msra.mxu0 %v66
    %138 = vmatprep.mubr.f32.mxu0 0.0
    %139 = vmatmul.mubr.f32.gmra.mrb[0].mxu0 %v67
    %v140 = vpop.f32.mrb[0].mxu0
    %v141 = vadd.f32 %v72, %v140
    %v142 = vpop.f32.mrb[0].mxu0
    %v143 = vadd.f32 %v72, %v142
    %144 = vdwg.mxu0
    %v145 = vld [vmem:[%s1] sm:$0x3]
    %vm146 = vcmp.ne.f32.partialorder %v145, 1.0
    %v149 = vcombine.low %v141, %v143
    %v151 = vunpack.c.l.s4 1966171168
    %v152 = vunpack.c.0.s8 %v151
    %v153 = vlaneseq
    %v154 = vshrl.u32 %v153, 7
    %v155 = vsub.s32 %v152, %v154
    %v156 = vrot.slane %v149, %v155
    %v158 = vunpack.c.l.s4 1966171168
    %v159 = vunpack.c.0.s8 %v158
    %v160 = vlaneseq
    %v161 = vshrl.u32 %v160, 7
    %v162 = vsub.s32 %v159, %v161
    %v163 = vrot.slane %v156, %v162
    %v165 = vsel %vm146, -1e+10, %v163
    %v166 = vlaneseq
    %vm167 = vcmp.ge.s32.totalorder %v166, 0
    %vm168 = vcmp.lt.s32.totalorder %v166, 256
    %vm169 = vmand %vm167, %vm168
    %170 = vst.msk [vmem:[#allocation5] sm:$0x3] %vm169, %v165
    %v171 = vcombine.high %v156, %v156
    %v173 = vunpack.c.l.s4 1966171168
    %v174 = vunpack.c.0.s8 %v173
    %v175 = vlaneseq
    %v176 = vshrl.u32 %v175, 7
    %v177 = vsub.s32 %v174, %v176
    %v178 = vrot.slane %v171, %v177
    %v180 = vsel %vm146, -1e+10, %v178
    %181 = vst.msk [vmem:[#allocation6] sm:$0x3] %vm169, %v180
    // Predicated region
    $region22: #{tpu_custom_call.1} parent=1 // pred_check
      _
    $region23: #{tpu_custom_call.1} parent=1 // pred_check_branch
      %183 = sbr.rel (0) target = $region25
    $region24: #{tpu_custom_call.1} parent=1 // pred_region
      %s185 = ssub.s32 32, 32
      %186 = vsyncadd [#allocation4], %s185
      %s188 = sshll.u32 [#allocation5], 4
      %s189 = int_to_ptr.vmem [resolvable:$true] %s188
      %191 = dma.vmem_to_hbm [thread:$0]  %s189, 32, %s4, [#allocation4]
    $region25: #{tpu_custom_call.1} parent=1 // pred_fallthru
      _
    // Predicated region
    $region26: #{tpu_custom_call.1} parent=1 // pred_check
      _
    $region27: #{tpu_custom_call.1} parent=1 // pred_check_branch
      %193 = sbr.rel (0) target = $region29
    $region28: #{tpu_custom_call.1} parent=1 // pred_region
      %s195 = ssub.s32 32, 32
      %196 = vsyncadd [#allocation7], %s195
      %s198 = sshll.u32 [#allocation6], 4
      %s199 = int_to_ptr.vmem [resolvable:$true] %s198
      %201 = dma.vmem_to_hbm [thread:$0]  %s199, 32, %s5, [#allocation7]
    $region29: #{tpu_custom_call.1} parent=1 // pred_fallthru
      _
    // Predicated region
    $region30: #{tpu_custom_call.1} parent=1 // pred_check
      _
    $region31: #{tpu_custom_call.1} parent=1 // pred_check_branch
      %203 = sbr.rel (0) target = $region33
    $region32: #{tpu_custom_call.1} parent=1 // pred_region
      %204 = dma.done [#allocation4], 32
    $region33: #{tpu_custom_call.1} parent=1 // pred_fallthru
      _
    // Predicated region
    $region34: #{tpu_custom_call.1} parent=1 // pred_check
      _
    $region35: #{tpu_custom_call.1} parent=1 // pred_check_branch
      %206 = sbr.rel (0) target = $region37
    $region36: #{tpu_custom_call.1} parent=1 // pred_region
      %207 = dma.done [#allocation7], 32
    $region37: #{tpu_custom_call.1} parent=1 // pred_fallthru
      _
    %208 = vsyncpa [#allocation3], 1
    %209 = vsyncpa [#allocation4], 1
    %210 = vsyncpa [#allocation7], 1

</llo_original>
